<compile_context>
chip_gen: v6e
topology: v6e:2x2x1
jax: 0.10.0
libtpu: 0.0.40
codegen_flags: <defaults>
</compile_context>

<pallas_src>
import jax
import jax.numpy as jnp
from jax.experimental import pallas as pl
from jax.experimental.pallas import tpu as pltpu


def _cdiv(a, b):
    return -(-a // b)


def _round_up(x, m):
    return _cdiv(x, m) * m


def _elu(x):
    # F.elu with alpha=1.0. The min() keeps the (always-evaluated) negative
    # branch finite for large positive x.
    # TODO(synk): switch to jnp.expm1 for exact torch parity near 0 once
    # Mosaic lowering of expm1 is confirmed (~1 f32 ulp difference today).
    return jnp.where(x > 0, x, jnp.exp(jnp.minimum(x, 0.0)) - 1.0)


def value_model_kernel(s_ref, r_ref,
                       w1a_ref, w1b_ref, b1_ref,
                       w2_ref, b2_ref,
                       w3_ref, b3_ref,
                       w4_ref, b4_ref,
                       o_ref):
    bf16 = jnp.bfloat16
    # fc1 on un-concatenated inputs: cat([s, r]) @ W1 == s @ W1[:S] + r @ W1[S:]
    # TODO(synk): could stage s|r into one (bt, S+R) bf16 scratch and do a
    # single K=S+R dot if fc1 ever shows up in the bundle dump.
    h = (jnp.dot(s_ref[...].astype(bf16), w1a_ref[...],
                 preferred_element_type=jnp.float32)
         + jnp.dot(r_ref[...].astype(bf16), w1b_ref[...],
                   preferred_element_type=jnp.float32)
         + b1_ref[...])
    h = _elu(h)
    h = _elu(jnp.dot(h.astype(bf16), w2_ref[...],
                     preferred_element_type=jnp.float32) + b2_ref[...])
    h = _elu(jnp.dot(h.astype(bf16), w3_ref[...],
                     preferred_element_type=jnp.float32) + b3_ref[...])
    # fc4: hidden -> 1. VPU multiply + XLU lane reduction instead of an N=1
    # MXU matmul (which would fill 1/128 output columns).
    v = jnp.sum(h * w4_ref[...], axis=-1, keepdims=True) + b4_ref[...]
    o_ref[...] = v.astype(o_ref.dtype)


def prepare_params(params, state_dim):
    """One-time weight prep: split W1 (removes the concat) and cast to kernel
    dtypes. Call ONCE and reuse the result; doing this per forward adds
    several small XLA slice/convert ops and an extra HBM pass over W1-W3."""
    f32, bf16 = jnp.float32, jnp.bfloat16
    H = params["w1"].shape[1]
    return {
        "w1a": params["w1"][:state_dim].astype(bf16),
        "w1b": params["w1"][state_dim:].astype(bf16),
        "b1": params["b1"].reshape(1, H).astype(f32),
        "w2": params["w2"].astype(bf16),
        "b2": params["b2"].reshape(1, H).astype(f32),
        "w3": params["w3"].astype(bf16),
        "b3": params["b3"].reshape(1, H).astype(f32),
        "w4": params["w4"].reshape(1, H).astype(f32),
        "b4": params["b4"].reshape(1, 1).astype(f32),
    }


def _choose_batch_tile(B, H, max_tile=4096):
    """Biggest tile that fits a conservative VMEM budget, while keeping >=2
    grid steps whenever possible so v7x's two TensorCores both get work
    (the extra ~0.35 us step is free on single-core v5e/v6e)."""
    if B <= 8:
        return max(B, 1)
    # ~8 MiB activation budget: activations/casts cost ~16 B per row at width H.
    vmem_cap = max(8, (((8 * 2 ** 20) // (16 * H)) // 8) * 8)
    bt = _round_up(_cdiv(B, 2), 8)          # two parallel batch tiles
    return max(8, min(bt, max_tile, vmem_cap))


def value_model_forward(state, rnn_hidden, prepared, *, batch_tile=None):
    """state: [B, state_dim], rnn_hidden: [B, rnn_dim] -> state_value: [B, 1].
    `prepared` is the output of prepare_params()."""
    B, S = state.shape
    _, R = rnn_hidden.shape
    H = prepared["w1a"].shape[1]
    assert prepared["w1a"].shape[0] == S and prepared["w1b"].shape[0] == R

    bt = batch_tile if batch_tile is not None else _choose_batch_tile(B, H)
    # Ragged last block instead of wrapper-side jnp.pad: OOB rows read garbage
    # and their writes are masked; safe because every row is independent.
    grid = (_cdiv(B, bt),)

    rep = lambda shape: pl.BlockSpec(shape, lambda i: (0, 0))  # replicated

    # Advisory cost for XLA's scheduler around this small custom call.
    flops = 2 * B * ((S + R) * H + 2 * H * H + H)
    transcendentals = 3 * B * H            # one exp per element per ELU
    bytes_accessed = (B * (S + R + 1) * 4                      # in/out rows
                      + ((S + R) * H + 2 * H * H) * 2          # bf16 weights
                      + (4 * H + 1) * 4)                       # biases + w4

    # Explicit VMEM budget (matters if hidden_dim is scaled up, esp. on v7x's
    # 64 MiB VMEM); for H=128 this resolves to the 32 MiB default.
    vmem_est = (2 * bt * (S + R) * 4                 # input double buffers
                + 2 * bt * 128 * 4                   # (bt,1) out padded to 128 lanes
                + 2 * ((S + R) * H + 2 * H * H) * 2  # bf16 weights, 2 buffers
                + 2 * (4 * H + 1) * 4                # biases + w4 row
                + 4 * bt * H * 4)                    # activation / cast headroom
    vmem_limit = int(min(48 * 2 ** 20, max(32 * 2 ** 20, 2 * vmem_est)))

    out = pl.pallas_call(
        value_model_kernel,
        out_shape=jax.ShapeDtypeStruct((B, 1), jnp.float32),
        grid_spec=pltpu.PrefetchScalarGridSpec(
            num_scalar_prefetch=0,
            grid=grid,
            in_specs=[
                pl.BlockSpec((bt, S), lambda i: (i, 0)),   # state batch tile
                pl.BlockSpec((bt, R), lambda i: (i, 0)),   # rnn_hidden tile
                rep((S, H)), rep((R, H)), rep((1, H)),     # fc1 (split) + b1
                rep((H, H)), rep((1, H)),                  # fc2
                rep((H, H)), rep((1, H)),                  # fc3
                rep((1, H)), rep((1, 1)),                  # fc4 (row) + b4
            ],
            out_specs=pl.BlockSpec((bt, 1), lambda i: (i, 0)),
        ),
        compiler_params=pltpu.CompilerParams(
            dimension_semantics=("parallel",),
            vmem_limit_bytes=vmem_limit),
        cost_estimate=pl.CostEstimate(
            flops=flops, transcendentals=transcendentals,
            bytes_accessed=bytes_accessed),
    )(state, rnn_hidden,
      prepared["w1a"], prepared["w1b"], prepared["b1"],
      prepared["w2"], prepared["b2"],
      prepared["w3"], prepared["b3"],
      prepared["w4"], prepared["b4"])
    return out


def init_params(key, feature_size, hidden_dim):
    """nn.Linear-style U(-1/sqrt(fan_in), 1/sqrt(fan_in)) init.
    Weights stored as [in, out] (i.e. PyTorch W.T)."""
    ks = jax.random.split(key, 8)

    def linear(kw, kb, fan_in, fan_out):
        bound = 1.0 / (fan_in ** 0.5)
        w = jax.random.uniform(kw, (fan_in, fan_out), jnp.float32, -bound, bound)
        b = jax.random.uniform(kb, (1, fan_out), jnp.float32, -bound, bound)
        return w, b

    w1, b1 = linear(ks[0], ks[1], feature_size, hidden_dim)
    w2, b2 = linear(ks[2], ks[3], hidden_dim, hidden_dim)
    w3, b3 = linear(ks[4], ks[5], hidden_dim, hidden_dim)
    w4, b4 = linear(ks[6], ks[7], hidden_dim, 1)
    return {"w1": w1, "b1": b1, "w2": w2, "b2": b2,
            "w3": w3, "b3": b3, "w4": w4, "b4": b4}


def reference_forward(state, rnn_hidden, params):
    """Plain-JAX reference using the same bf16-operand / f32-accumulate math.
    (Intentional precision trade-off vs. a pure-f32 PyTorch ValueModel.)"""
    bf16, f32 = jnp.bfloat16, jnp.float32
    x = jnp.concatenate([state, rnn_hidden], axis=1).astype(bf16)
    h = _elu(jnp.dot(x, params["w1"].astype(bf16),
                     preferred_element_type=f32) + params["b1"])
    h = _elu(jnp.dot(h.astype(bf16), params["w2"].astype(bf16),
                     preferred_element_type=f32) + params["b2"])
    h = _elu(jnp.dot(h.astype(bf16), params["w3"].astype(bf16),
                     preferred_element_type=f32) + params["b3"])
    return (jnp.sum(h * params["w4"].reshape(1, -1), axis=-1, keepdims=True)
            + params["b4"].reshape(1, 1))


if __name__ == "__main__":
    # Small shapes: batch=16, state_dim=16, rnn_hidden_dim=16
    # -> feature_size=32, hidden_dim=128 (128-aligned for TPU lanes).
    B, STATE_DIM, RNN_DIM, HIDDEN = 16, 16, 16, 128
    FEATURE_SIZE = STATE_DIM + RNN_DIM

    key = jax.random.PRNGKey(0)
    k_state, k_rnn, k_params = jax.random.split(key, 3)

    state = jax.random.normal(k_state, (B, STATE_DIM), jnp.float32)
    rnn_hidden = jax.random.normal(k_rnn, (B, RNN_DIM), jnp.float32)
    params = init_params(k_params, FEATURE_SIZE, HIDDEN)

    prepared = prepare_params(params, STATE_DIM)   # one-time weight prep
    out = value_model_forward(state, rnn_hidden, prepared)
    out = jax.block_until_ready(out)

    ref = reference_forward(state, rnn_hidden, params)
    assert out.shape == (B, 1), out.shape
    err = float(jnp.max(jnp.abs(out - ref)))
    assert jnp.allclose(out, ref, atol=2e-3, rtol=2e-3), f"mismatch, max_abs_err={err}"

    print("KERNEL_OK")
</pallas_src>

<mosaic_0001>
module attributes {stable_mosaic.version = 11 : i64} {
  func.func @value_model_kernel(%arg0: i32, %arg1: memref<8x16xf32, #tpu.memory_space<vmem>>, %arg2: memref<8x16xf32, #tpu.memory_space<vmem>>, %arg3: memref<16x128xbf16, #tpu.memory_space<vmem>>, %arg4: memref<16x128xbf16, #tpu.memory_space<vmem>>, %arg5: memref<1x128xf32, #tpu.memory_space<vmem>>, %arg6: memref<128x128xbf16, #tpu.memory_space<vmem>>, %arg7: memref<1x128xf32, #tpu.memory_space<vmem>>, %arg8: memref<128x128xbf16, #tpu.memory_space<vmem>>, %arg9: memref<1x128xf32, #tpu.memory_space<vmem>>, %arg10: memref<1x128xf32, #tpu.memory_space<vmem>>, %arg11: memref<1x1xf32, #tpu.memory_space<vmem>>, %arg12: memref<8x1xf32, #tpu.memory_space<vmem>>) attributes {dimension_semantics = [#tpu.dimension_semantics<parallel>], iteration_bounds = array<i64: 2>, scalar_prefetch = 0 : i64, scratch_operands = 0 : i64, tpu.core_type = #tpu.core_type<tc>, window_params = [{transform_indices = @transform_0, window_bounds = array<i64: 8, 16>}, {transform_indices = @transform_1, window_bounds = array<i64: 8, 16>}, {pipeline_mode = #tpu.pipeline_mode<synchronous>, transform_indices = @transform_2, window_bounds = array<i64: 16, 128>}, {pipeline_mode = #tpu.pipeline_mode<synchronous>, transform_indices = @transform_3, window_bounds = array<i64: 16, 128>}, {pipeline_mode = #tpu.pipeline_mode<synchronous>, transform_indices = @transform_4, window_bounds = array<i64: 1, 128>}, {pipeline_mode = #tpu.pipeline_mode<synchronous>, transform_indices = @transform_5, window_bounds = array<i64: 128, 128>}, {pipeline_mode = #tpu.pipeline_mode<synchronous>, transform_indices = @transform_6, window_bounds = array<i64: 1, 128>}, {pipeline_mode = #tpu.pipeline_mode<synchronous>, transform_indices = @transform_7, window_bounds = array<i64: 128, 128>}, {pipeline_mode = #tpu.pipeline_mode<synchronous>, transform_indices = @transform_8, window_bounds = array<i64: 1, 128>}, {pipeline_mode = #tpu.pipeline_mode<synchronous>, transform_indices = @transform_9, window_bounds = array<i64: 1, 128>}, {pipeline_mode = #tpu.pipeline_mode<synchronous>, transform_indices = @transform_10, window_bounds = array<i64: 1, 1>}, {transform_indices = @transform_11, window_bounds = array<i64: 8, 1>}]} {
    %c0 = arith.constant 0 : index
    %c0_0 = arith.constant 0 : index
    %0 = vector.load %arg1[%c0, %c0_0] : memref<8x16xf32, #tpu.memory_space<vmem>>, vector<8x16xf32>
    %1 = arith.truncf %0 : vector<8x16xf32> to vector<8x16xbf16>
    %c0_1 = arith.constant 0 : index
    %c0_2 = arith.constant 0 : index
    %2 = vector.load %arg3[%c0_1, %c0_2] : memref<16x128xbf16, #tpu.memory_space<vmem>>, vector<16x128xbf16>
    %cst = arith.constant dense<0.000000e+00> : vector<8x128xf32>
    %3 = tpu.matmul %1, %2, %cst {dimension_numbers = #tpu.dot_dimension_numbers<[1], [0], [0], [1], [0, 0, 1, 1], [], []>} : vector<8x16xbf16>, vector<16x128xbf16>, vector<8x128xf32> -> vector<8x128xf32>
    %c0_3 = arith.constant 0 : index
    %c0_4 = arith.constant 0 : index
    %4 = vector.load %arg2[%c0_3, %c0_4] : memref<8x16xf32, #tpu.memory_space<vmem>>, vector<8x16xf32>
    %5 = arith.truncf %4 : vector<8x16xf32> to vector<8x16xbf16>
    %c0_5 = arith.constant 0 : index
    %c0_6 = arith.constant 0 : index
    %6 = vector.load %arg4[%c0_5, %c0_6] : memref<16x128xbf16, #tpu.memory_space<vmem>>, vector<16x128xbf16>
    %cst_7 = arith.constant dense<0.000000e+00> : vector<8x128xf32>
    %7 = tpu.matmul %5, %6, %cst_7 {dimension_numbers = #tpu.dot_dimension_numbers<[1], [0], [0], [1], [0, 0, 1, 1], [], []>} : vector<8x16xbf16>, vector<16x128xbf16>, vector<8x128xf32> -> vector<8x128xf32>
    %8 = arith.addf %3, %7 : vector<8x128xf32>
    %c0_8 = arith.constant 0 : index
    %c0_9 = arith.constant 0 : index
    %9 = vector.load %arg5[%c0_8, %c0_9] : memref<1x128xf32, #tpu.memory_space<vmem>>, vector<1x128xf32>
    %10 = vector.broadcast %9 : vector<1x128xf32> to vector<8x128xf32>
    %11 = arith.addf %8, %10 : vector<8x128xf32>
    %cst_10 = arith.constant 0.000000e+00 : f32
    %12 = vector.broadcast %cst_10 : f32 to vector<8x128xf32>
    %13 = arith.cmpf ogt, %11, %12 : vector<8x128xf32>
    %cst_11 = arith.constant 0.000000e+00 : f32
    %14 = vector.broadcast %cst_11 : f32 to vector<8x128xf32>
    %15 = arith.minimumf %11, %14 : vector<8x128xf32>
    %16 = math.exp %15 : vector<8x128xf32>
    %cst_12 = arith.constant 1.000000e+00 : f32
    %17 = vector.broadcast %cst_12 : f32 to vector<8x128xf32>
    %18 = arith.subf %16, %17 : vector<8x128xf32>
    %19 = arith.select %13, %11, %18 : vector<8x128xi1>, vector<8x128xf32>
    %20 = arith.truncf %19 : vector<8x128xf32> to vector<8x128xbf16>
    %c0_13 = arith.constant 0 : index
    %c0_14 = arith.constant 0 : index
    %21 = vector.load %arg6[%c0_13, %c0_14] : memref<128x128xbf16, #tpu.memory_space<vmem>>, vector<128x128xbf16>
    %cst_15 = arith.constant dense<0.000000e+00> : vector<8x128xf32>
    %22 = tpu.matmul %20, %21, %cst_15 {dimension_numbers = #tpu.dot_dimension_numbers<[1], [0], [0], [1], [0, 0, 1, 1], [], []>} : vector<8x128xbf16>, vector<128x128xbf16>, vector<8x128xf32> -> vector<8x128xf32>
    %c0_16 = arith.constant 0 : index
    %c0_17 = arith.constant 0 : index
    %23 = vector.load %arg7[%c0_16, %c0_17] : memref<1x128xf32, #tpu.memory_space<vmem>>, vector<1x128xf32>
    %24 = vector.broadcast %23 : vector<1x128xf32> to vector<8x128xf32>
    %25 = arith.addf %22, %24 : vector<8x128xf32>
    %cst_18 = arith.constant 0.000000e+00 : f32
    %26 = vector.broadcast %cst_18 : f32 to vector<8x128xf32>
    %27 = arith.cmpf ogt, %25, %26 : vector<8x128xf32>
    %cst_19 = arith.constant 0.000000e+00 : f32
    %28 = vector.broadcast %cst_19 : f32 to vector<8x128xf32>
    %29 = arith.minimumf %25, %28 : vector<8x128xf32>
    %30 = math.exp %29 : vector<8x128xf32>
    %cst_20 = arith.constant 1.000000e+00 : f32
    %31 = vector.broadcast %cst_20 : f32 to vector<8x128xf32>
    %32 = arith.subf %30, %31 : vector<8x128xf32>
    %33 = arith.select %27, %25, %32 : vector<8x128xi1>, vector<8x128xf32>
    %34 = arith.truncf %33 : vector<8x128xf32> to vector<8x128xbf16>
    %c0_21 = arith.constant 0 : index
    %c0_22 = arith.constant 0 : index
    %35 = vector.load %arg8[%c0_21, %c0_22] : memref<128x128xbf16, #tpu.memory_space<vmem>>, vector<128x128xbf16>
    %cst_23 = arith.constant dense<0.000000e+00> : vector<8x128xf32>
    %36 = tpu.matmul %34, %35, %cst_23 {dimension_numbers = #tpu.dot_dimension_numbers<[1], [0], [0], [1], [0, 0, 1, 1], [], []>} : vector<8x128xbf16>, vector<128x128xbf16>, vector<8x128xf32> -> vector<8x128xf32>
    %c0_24 = arith.constant 0 : index
    %c0_25 = arith.constant 0 : index
    %37 = vector.load %arg9[%c0_24, %c0_25] : memref<1x128xf32, #tpu.memory_space<vmem>>, vector<1x128xf32>
    %38 = vector.broadcast %37 : vector<1x128xf32> to vector<8x128xf32>
    %39 = arith.addf %36, %38 : vector<8x128xf32>
    %cst_26 = arith.constant 0.000000e+00 : f32
    %40 = vector.broadcast %cst_26 : f32 to vector<8x128xf32>
    %41 = arith.cmpf ogt, %39, %40 : vector<8x128xf32>
    %cst_27 = arith.constant 0.000000e+00 : f32
    %42 = vector.broadcast %cst_27 : f32 to vector<8x128xf32>
    %43 = arith.minimumf %39, %42 : vector<8x128xf32>
    %44 = math.exp %43 : vector<8x128xf32>
    %cst_28 = arith.constant 1.000000e+00 : f32
    %45 = vector.broadcast %cst_28 : f32 to vector<8x128xf32>
    %46 = arith.subf %44, %45 : vector<8x128xf32>
    %47 = arith.select %41, %39, %46 : vector<8x128xi1>, vector<8x128xf32>
    %c0_29 = arith.constant 0 : index
    %c0_30 = arith.constant 0 : index
    %48 = vector.load %arg10[%c0_29, %c0_30] : memref<1x128xf32, #tpu.memory_space<vmem>>, vector<1x128xf32>
    %49 = vector.broadcast %48 : vector<1x128xf32> to vector<8x128xf32>
    %50 = arith.mulf %47, %49 : vector<8x128xf32>
    %cst_31 = arith.constant dense<0.000000e+00> : vector<8xf32>
    %51 = vector.multi_reduction <add>, %50, %cst_31 [1] : vector<8x128xf32> to vector<8xf32>
    %52 = vector.shape_cast %51 : vector<8xf32> to vector<8x1xf32>
    %c0_32 = arith.constant 0 : index
    %c0_33 = arith.constant 0 : index
    %53 = vector.load %arg11[%c0_32, %c0_33] : memref<1x1xf32, #tpu.memory_space<vmem>>, vector<1x1xf32>
    %54 = vector.broadcast %53 : vector<1x1xf32> to vector<8x1xf32>
    %55 = arith.addf %52, %54 : vector<8x1xf32>
    %c0_34 = arith.constant 0 : index
    %c0_35 = arith.constant 0 : index
    %56 = vector.load %arg12[%c0_34, %c0_35] : memref<8x1xf32, #tpu.memory_space<vmem>>, vector<8x1xf32>
    tpu.vector_store %arg12[%c0_34, %c0_35], %55 {strides = array<i32>} : memref<8x1xf32, #tpu.memory_space<vmem>>, vector<8x1xf32>,
    return
  }
  func.func @transform_0(%arg0: i32) -> (i32, i32) {
    %c0_i32 = arith.constant 0 : i32
    %c0_i32_0 = arith.constant 0 : i32
    return %arg0, %c0_i32 : i32, i32
  }
  func.func @transform_1(%arg0: i32) -> (i32, i32) {
    %c0_i32 = arith.constant 0 : i32
    %c0_i32_0 = arith.constant 0 : i32
    return %arg0, %c0_i32 : i32, i32
  }
  func.func @transform_2(%arg0: i32) -> (i32, i32) {
    %c0_i32 = arith.constant 0 : i32
    %c0_i32_0 = arith.constant 0 : i32
    %c0_i32_1 = arith.constant 0 : i32
    return %c0_i32, %c0_i32_0 : i32, i32
  }
  func.func @transform_3(%arg0: i32) -> (i32, i32) {
    %c0_i32 = arith.constant 0 : i32
    %c0_i32_0 = arith.constant 0 : i32
    %c0_i32_1 = arith.constant 0 : i32
    return %c0_i32, %c0_i32_0 : i32, i32
  }
  func.func @transform_4(%arg0: i32) -> (i32, i32) {
    %c0_i32 = arith.constant 0 : i32
    %c0_i32_0 = arith.constant 0 : i32
    %c0_i32_1 = arith.constant 0 : i32
    return %c0_i32, %c0_i32_0 : i32, i32
  }
  func.func @transform_5(%arg0: i32) -> (i32, i32) {
    %c0_i32 = arith.constant 0 : i32
    %c0_i32_0 = arith.constant 0 : i32
    %c0_i32_1 = arith.constant 0 : i32
    return %c0_i32, %c0_i32_0 : i32, i32
  }
  func.func @transform_6(%arg0: i32) -> (i32, i32) {
    %c0_i32 = arith.constant 0 : i32
    %c0_i32_0 = arith.constant 0 : i32
    %c0_i32_1 = arith.constant 0 : i32
    return %c0_i32, %c0_i32_0 : i32, i32
  }
  func.func @transform_7(%arg0: i32) -> (i32, i32) {
    %c0_i32 = arith.constant 0 : i32
    %c0_i32_0 = arith.constant 0 : i32
    %c0_i32_1 = arith.constant 0 : i32
    return %c0_i32, %c0_i32_0 : i32, i32
  }
  func.func @transform_8(%arg0: i32) -> (i32, i32) {
    %c0_i32 = arith.constant 0 : i32
    %c0_i32_0 = arith.constant 0 : i32
    %c0_i32_1 = arith.constant 0 : i32
    return %c0_i32, %c0_i32_0 : i32, i32
  }
  func.func @transform_9(%arg0: i32) -> (i32, i32) {
    %c0_i32 = arith.constant 0 : i32
    %c0_i32_0 = arith.constant 0 : i32
    %c0_i32_1 = arith.constant 0 : i32
    return %c0_i32, %c0_i32_0 : i32, i32
  }
  func.func @transform_10(%arg0: i32) -> (i32, i32) {
    %c0_i32 = arith.constant 0 : i32
    %c0_i32_0 = arith.constant 0 : i32
    %c0_i32_1 = arith.constant 0 : i32
    return %c0_i32, %c0_i32_0 : i32, i32
  }
  func.func @transform_11(%arg0: i32) -> (i32, i32) {
    %c0_i32 = arith.constant 0 : i32
    %c0_i32_0 = arith.constant 0 : i32
    return %arg0, %c0_i32 : i32, i32
  }
}

</mosaic_0001>

<llo_original>
// kernel: tpu_custom_call.1
$region0: #{tpu_custom_call.1}
  #allocation0 [shape = 'u32[]', space=smem, size = 0x4, offset = 0x4, fixed_abs, tag = 'smem constant byte address 0x4 - core index']
  #allocation1 [shape = 'u32[144,128]{1,0:T(1,128)}', space=vmem, size = 0x12000, scoped, tag = 'internal scratch']
  #allocation2 [shape = 'f32[1,1]{1,0:T(1,128)S(1)}', space=vmem, size = 0x200, scoped, tag = 'scoped memory for tpu_custom_call.1']
  %s0 = inlined_call_operand.hbm [shape: f32[16,16], index: 0, kind: input, shape index: {}]
  %s1 = inlined_call_operand.hbm [shape: f32[16,16], index: 1, kind: input, shape index: {}]
  %s2 = inlined_call_operand.hbm [shape: bf16[16,128], index: 2, kind: input, shape index: {}]
  %s3 = inlined_call_operand.hbm [shape: bf16[16,128], index: 3, kind: input, shape index: {}]
  %s4 = inlined_call_operand.vmem [shape: f32[1,128], index: 4, kind: input, shape index: {}]
  %s5 = inlined_call_operand.hbm [shape: bf16[128,128], index: 5, kind: input, shape index: {}]
  %s6 = inlined_call_operand.vmem [shape: f32[1,128], index: 6, kind: input, shape index: {}]
  %s7 = inlined_call_operand.hbm [shape: bf16[128,128], index: 7, kind: input, shape index: {}]
  %s8 = inlined_call_operand.vmem [shape: f32[1,128], index: 8, kind: input, shape index: {}]
  %s9 = inlined_call_operand.vmem [shape: f32[1,128], index: 9, kind: input, shape index: {}]
  %s10 = inlined_call_operand.<no memory space> [shape: f32[1,1], index: 10, kind: input, shape index: {}]
  %s11 = inlined_call_operand.vmem [shape: f32[16,1], index: 11, kind: output, shape index: {}]
  %s12 = sld [smem:[#allocation0]]
  $region101: #{tpu_custom_call.1} parent=0
    _
  %s14 = ssub.s32 1, %s12
  %s15 = scalar_select 0, %s14, %s12
  %v16 = vstv %s10
  %17 = vst [vmem:[#allocation2] sm:$0x1] %v16
  $region1: #{tpu_custom_call.1} parent=0
    #allocation3 [shape = 'u8[8192]{0}', space=vmem, size = 0x2000, scoped, tag = 'input window, operand 0']
    #allocation4 [shape = 's32[2]{0}', space=sflag, size = 0x8, scoped, tag = 'scoped memory for tpu_custom_call.1']
    #allocation5 [shape = 'u8[8192]{0}', space=vmem, size = 0x2000, scoped, tag = 'input window, operand 1']
    #allocation6 [shape = 's32[2]{0}', space=sflag, size = 0x8, scoped, tag = 'scoped memory for tpu_custom_call.1']
    #allocation7 [shape = 'u8[4096]{0}', space=vmem, size = 0x1000, scoped, tag = 'input window, operand 2, single buffered']
    #allocation8 [shape = 'u8[4096]{0}', space=vmem, size = 0x1000, scoped, tag = 'input window, operand 3, single buffered']
    #allocation9 [shape = 's32[1]{0}', space=sflag, size = 0x4, scoped, tag = 'scoped memory for tpu_custom_call.1']
    #allocation10 [shape = 'u8[32768]{0}', space=vmem, size = 0x8000, scoped, tag = 'input window, operand 5, single buffered']
    #allocation11 [shape = 'u8[32768]{0}', space=vmem, size = 0x8000, scoped, tag = 'input window, operand 7, single buffered']
    #allocation12 [shape = 's32[1]{0}', space=sflag, size = 0x4, scoped, tag = 'scoped memory for tpu_custom_call.1']
    %18 = vsyncpa [#allocation4], 0
    %s19 = scalar_lea.sflag [#allocation4], 1
    %20 = vsyncpa %s19, 0
    %21 = vsyncpa [#allocation6], 0
    %s22 = scalar_lea.sflag [#allocation6], 1
    %23 = vsyncpa %s22, 0
    %24 = vsyncpa [#allocation9], 0
    %25 = vsyncpa [#allocation12], 0
    loop: start=0, step=1, limit=4
    $region2: #{tpu_custom_call.1} parent=1 // loop_pre_header
      _
    $region3: #{tpu_custom_call.1} parent=1 // loop_header
      %s27 = sphi 0, %s31
      %p28 = scmp.ge.s32.totalorder %s27, 4
      %s37 = sphi 0, %s39
      %s40 = sphi 0, %s37
      %s41 = sphi 0, %s40
      %s57 = sphi 0, %s41
      %s63 = sphi 0, %s65
      %s66 = sphi 0, %s63
      %s67 = sphi 0, %s66
      %s83 = sphi 0, %s67
      %s87 = sphi 0, %s87
      %s89 = sphi 0, %s87
      %s90 = sphi 0, %s89
      %s104 = sphi 0, %s90
      %s108 = sphi 0, %s108
      %s110 = sphi 0, %s108
      %s111 = sphi 0, %s110
      %s125 = sphi 0, %s111
      %s129 = sphi 0, %s129
      %s131 = sphi 0, %s129
      %s132 = sphi 0, %s131
      %s146 = sphi 0, %s132
      %s150 = sphi 0, %s150
      %s152 = sphi 0, %s150
      %s153 = sphi 0, %s152
      %s167 = sphi 0, %s153
      %s171 = sphi 0, %s171
      %s173 = sphi 0, %s171
      %s174 = sphi 0, %s173
      %s188 = sphi 0, %s174
      %s192 = sphi 0, %s192
      %s194 = sphi 0, %s192
      %s195 = sphi 0, %s194
      %s209 = sphi 0, %s195
      %s213 = sphi 0, %s213
      %s215 = sphi 0, %s213
      %s216 = sphi 0, %s215
      %s230 = sphi 0, %s216
      %s234 = sphi 0, %s234
      %s236 = sphi 0, %s234
      %s237 = sphi 0, %s236
      %s251 = sphi 0, %s237
      %s255 = sphi 0, %s255
      %s257 = sphi 0, %s255
      %s258 = sphi 0, %s257
      %s272 = sphi 0, %s258
      %s278 = sphi 0, %s280
      %s281 = sphi 0, %s278
      %s282 = sphi 0, %s281
      %s298 = sphi 0, %s282
    $region4: #{tpu_custom_call.1} parent=1 // loop_header_branch
      %30 = sbr.rel (%p28) target = $region8
    $region5: #{tpu_custom_call.1} parent=1 // loop_body
      %s32 = ssub.s32 %s27, 1
      %s33 = ssub.s32 %s27, 2
      %s34 = sadd.s32 %s27, 1
      %s35 = ssub.s32 %s27, %s34
      %p36 = scmp.eq.s32.totalorder %s35, 0
      %s38 = sadd.s32 %s37, 1
      %s39 = scalar_select %p36, %s37, %s38
      %p42 = pneg %p36
      %p43 = scmp.eq.s32.totalorder %s27, 1
      %p44 = por %p42, %p43
      %p45 = scmp.ne.s32.totalorder %s37, %s40
      %p46 = scmp.eq.s32.totalorder %s27, 0
      %p47 = por %p45, %p46
      %p48 = scmp.ne.s32.totalorder %s37, %s40
      %p49 = scmp.eq.s32.totalorder %s32, 1
      %p50 = por %p48, %p49
      %p51 = scmp.ne.s32.totalorder %s40, %s41
      %p52 = scmp.eq.s32.totalorder %s32, 0
      %p53 = por %p51, %p52
      %p54 = scmp.ne.s32.totalorder %s40, %s41
      %p55 = scmp.eq.s32.totalorder %s33, 1
      %p56 = por %p54, %p55
      %p58 = scmp.ne.s32.totalorder %s41, %s57
      %p59 = scmp.eq.s32.totalorder %s33, 0
      %p60 = por %p58, %p59
      %s61 = ssub.s32 %s27, %s34
      %p62 = scmp.eq.s32.totalorder %s61, 0
      %s64 = sadd.s32 %s63, 1
      %s65 = scalar_select %p62, %s63, %s64
      %p68 = pneg %p62
      %p69 = scmp.eq.s32.totalorder %s27, 1
      %p70 = por %p68, %p69
      %p71 = scmp.ne.s32.totalorder %s63, %s66
      %p72 = scmp.eq.s32.totalorder %s27, 0
      %p73 = por %p71, %p72
      %p74 = scmp.ne.s32.totalorder %s63, %s66
      %p75 = scmp.eq.s32.totalorder %s32, 1
      %p76 = por %p74, %p75
      %p77 = scmp.ne.s32.totalorder %s66, %s67
      %p78 = scmp.eq.s32.totalorder %s32, 0
      %p79 = por %p77, %p78
      %p80 = scmp.ne.s32.totalorder %s66, %s67
      %p81 = scmp.eq.s32.totalorder %s33, 1
      %p82 = por %p80, %p81
      %p84 = scmp.ne.s32.totalorder %s67, %s83
      %p85 = scmp.eq.s32.totalorder %s33, 0
      %p86 = por %p84, %p85
      %s88 = sadd.s32 %s87, 1
      %p91 = scmp.eq.s32.totalorder %s27, 1
      %p92 = scmp.ne.s32.totalorder %s87, %s89
      %p93 = scmp.eq.s32.totalorder %s27, 0
      %p94 = por %p92, %p93
      %p95 = scmp.ne.s32.totalorder %s87, %s89
      %p96 = scmp.eq.s32.totalorder %s32, 1
      %p97 = por %p95, %p96
      %p98 = scmp.ne.s32.totalorder %s89, %s90
      %p99 = scmp.eq.s32.totalorder %s32, 0
      %p100 = por %p98, %p99
      %p101 = scmp.ne.s32.totalorder %s89, %s90
      %p102 = scmp.eq.s32.totalorder %s33, 1
      %p103 = por %p101, %p102
      %p105 = scmp.ne.s32.totalorder %s90, %s104
      %p106 = scmp.eq.s32.totalorder %s33, 0
      %p107 = por %p105, %p106
      %s109 = sadd.s32 %s108, 1
      %p112 = scmp.eq.s32.totalorder %s27, 1
      %p113 = scmp.ne.s32.totalorder %s108, %s110
      %p114 = scmp.eq.s32.totalorder %s27, 0
      %p115 = por %p113, %p114
      %p116 = scmp.ne.s32.totalorder %s108, %s110
      %p117 = scmp.eq.s32.totalorder %s32, 1
      %p118 = por %p116, %p117
      %p119 = scmp.ne.s32.totalorder %s110, %s111
      %p120 = scmp.eq.s32.totalorder %s32, 0
      %p121 = por %p119, %p120
      %p122 = scmp.ne.s32.totalorder %s110, %s111
      %p123 = scmp.eq.s32.totalorder %s33, 1
      %p124 = por %p122, %p123
      %p126 = scmp.ne.s32.totalorder %s111, %s125
      %p127 = scmp.eq.s32.totalorder %s33, 0
      %p128 = por %p126, %p127
      %s130 = sadd.s32 %s129, 1
      %p133 = scmp.eq.s32.totalorder %s27, 1
      %p134 = scmp.ne.s32.totalorder %s129, %s131
      %p135 = scmp.eq.s32.totalorder %s27, 0
      %p136 = por %p134, %p135
      %p137 = scmp.ne.s32.totalorder %s129, %s131
      %p138 = scmp.eq.s32.totalorder %s32, 1
      %p139 = por %p137, %p138
      %p140 = scmp.ne.s32.totalorder %s131, %s132
      %p141 = scmp.eq.s32.totalorder %s32, 0
      %p142 = por %p140, %p141
      %p143 = scmp.ne.s32.totalorder %s131, %s132
      %p144 = scmp.eq.s32.totalorder %s33, 1
      %p145 = por %p143, %p144
      %p147 = scmp.ne.s32.totalorder %s132, %s146
      %p148 = scmp.eq.s32.totalorder %s33, 0
      %p149 = por %p147, %p148
      %s151 = sadd.s32 %s150, 1
      %p154 = scmp.eq.s32.totalorder %s27, 1
      %p155 = scmp.ne.s32.totalorder %s150, %s152
      %p156 = scmp.eq.s32.totalorder %s27, 0
      %p157 = por %p155, %p156
      %p158 = scmp.ne.s32.totalorder %s150, %s152
      %p159 = scmp.eq.s32.totalorder %s32, 1
      %p160 = por %p158, %p159
      %p161 = scmp.ne.s32.totalorder %s152, %s153
      %p162 = scmp.eq.s32.totalorder %s32, 0
      %p163 = por %p161, %p162
      %p164 = scmp.ne.s32.totalorder %s152, %s153
      %p165 = scmp.eq.s32.totalorder %s33, 1
      %p166 = por %p164, %p165
      %p168 = scmp.ne.s32.totalorder %s153, %s167
      %p169 = scmp.eq.s32.totalorder %s33, 0
      %p170 = por %p168, %p169
      %s172 = sadd.s32 %s171, 1
      %p175 = scmp.eq.s32.totalorder %s27, 1
      %p176 = scmp.ne.s32.totalorder %s171, %s173
      %p177 = scmp.eq.s32.totalorder %s27, 0
      %p178 = por %p176, %p177
      %p179 = scmp.ne.s32.totalorder %s171, %s173
      %p180 = scmp.eq.s32.totalorder %s32, 1
      %p181 = por %p179, %p180
      %p182 = scmp.ne.s32.totalorder %s173, %s174
      %p183 = scmp.eq.s32.totalorder %s32, 0
      %p184 = por %p182, %p183
      %p185 = scmp.ne.s32.totalorder %s173, %s174
      %p186 = scmp.eq.s32.totalorder %s33, 1
      %p187 = por %p185, %p186
      %p189 = scmp.ne.s32.totalorder %s174, %s188
      %p190 = scmp.eq.s32.totalorder %s33, 0
      %p191 = por %p189, %p190
      %s193 = sadd.s32 %s192, 1
      %p196 = scmp.eq.s32.totalorder %s27, 1
      %p197 = scmp.ne.s32.totalorder %s192, %s194
      %p198 = scmp.eq.s32.totalorder %s27, 0
      %p199 = por %p197, %p198
      %p200 = scmp.ne.s32.totalorder %s192, %s194
      %p201 = scmp.eq.s32.totalorder %s32, 1
      %p202 = por %p200, %p201
      %p203 = scmp.ne.s32.totalorder %s194, %s195
      %p204 = scmp.eq.s32.totalorder %s32, 0
      %p205 = por %p203, %p204
      %p206 = scmp.ne.s32.totalorder %s194, %s195
      %p207 = scmp.eq.s32.totalorder %s33, 1
      %p208 = por %p206, %p207
      %p210 = scmp.ne.s32.totalorder %s195, %s209
      %p211 = scmp.eq.s32.totalorder %s33, 0
      %p212 = por %p210, %p211
      %s214 = sadd.s32 %s213, 1
      %p217 = scmp.eq.s32.totalorder %s27, 1
      %p218 = scmp.ne.s32.totalorder %s213, %s215
      %p219 = scmp.eq.s32.totalorder %s27, 0
      %p220 = por %p218, %p219
      %p221 = scmp.ne.s32.totalorder %s213, %s215
      %p222 = scmp.eq.s32.totalorder %s32, 1
      %p223 = por %p221, %p222
      %p224 = scmp.ne.s32.totalorder %s215, %s216
      %p225 = scmp.eq.s32.totalorder %s32, 0
      %p226 = por %p224, %p225
      %p227 = scmp.ne.s32.totalorder %s215, %s216
      %p228 = scmp.eq.s32.totalorder %s33, 1
      %p229 = por %p227, %p228
      %p231 = scmp.ne.s32.totalorder %s216, %s230
      %p232 = scmp.eq.s32.totalorder %s33, 0
      %p233 = por %p231, %p232
      %s235 = sadd.s32 %s234, 1
      %p238 = scmp.eq.s32.totalorder %s27, 1
      %p239 = scmp.ne.s32.totalorder %s234, %s236
      %p240 = scmp.eq.s32.totalorder %s27, 0
      %p241 = por %p239, %p240
      %p242 = scmp.ne.s32.totalorder %s234, %s236
      %p243 = scmp.eq.s32.totalorder %s32, 1
      %p244 = por %p242, %p243
      %p245 = scmp.ne.s32.totalorder %s236, %s237
      %p246 = scmp.eq.s32.totalorder %s32, 0
      %p247 = por %p245, %p246
      %p248 = scmp.ne.s32.totalorder %s236, %s237
      %p249 = scmp.eq.s32.totalorder %s33, 1
      %p250 = por %p248, %p249
      %p252 = scmp.ne.s32.totalorder %s237, %s251
      %p253 = scmp.eq.s32.totalorder %s33, 0
      %p254 = por %p252, %p253
      %s256 = sadd.s32 %s255, 1
      %p259 = scmp.eq.s32.totalorder %s27, 1
      %p260 = scmp.ne.s32.totalorder %s255, %s257
      %p261 = scmp.eq.s32.totalorder %s27, 0
      %p262 = por %p260, %p261
      %p263 = scmp.ne.s32.totalorder %s255, %s257
      %p264 = scmp.eq.s32.totalorder %s32, 1
      %p265 = por %p263, %p264
      %p266 = scmp.ne.s32.totalorder %s257, %s258
      %p267 = scmp.eq.s32.totalorder %s32, 0
      %p268 = por %p266, %p267
      %p269 = scmp.ne.s32.totalorder %s257, %s258
      %p270 = scmp.eq.s32.totalorder %s33, 1
      %p271 = por %p269, %p270
      %p273 = scmp.ne.s32.totalorder %s258, %s272
      %p274 = scmp.eq.s32.totalorder %s33, 0
      %p275 = por %p273, %p274
      %s276 = ssub.s32 %s27, %s34
      %p277 = scmp.eq.s32.totalorder %s276, 0
      %s279 = sadd.s32 %s278, 1
      %s280 = scalar_select %p277, %s278, %s279
      %p283 = pneg %p277
      %p284 = scmp.eq.s32.totalorder %s27, 1
      %p285 = por %p283, %p284
      %p286 = scmp.ne.s32.totalorder %s278, %s281
      %p287 = scmp.eq.s32.totalorder %s27, 0
      %p288 = por %p286, %p287
      %p289 = scmp.ne.s32.totalorder %s278, %s281
      %p290 = scmp.eq.s32.totalorder %s32, 1
      %p291 = por %p289, %p290
      %p292 = scmp.ne.s32.totalorder %s281, %s282
      %p293 = scmp.eq.s32.totalorder %s32, 0
      %p294 = por %p292, %p293
      %p295 = scmp.ne.s32.totalorder %s281, %s282
      %p296 = scmp.eq.s32.totalorder %s33, 1
      %p297 = por %p295, %p296
      %p299 = scmp.ne.s32.totalorder %s282, %s298
      %p300 = scmp.eq.s32.totalorder %s33, 0
      %p301 = por %p299, %p300
      %p302 = scmp.le.s32.totalorder 1, %s27
      %p303 = scmp.lt.s32.totalorder %s27, 3
      %p304 = pnand %p302, %p303
      %p305 = pneg %p304
      // Predicated region
      $region9: #{tpu_custom_call.1} parent=5 // pred_check
        _
      $region10: #{tpu_custom_call.1} parent=5 // pred_check_branch
        %307 = sbr.rel (%p304) target = $region12
      $region11: #{tpu_custom_call.1} parent=5 // pred_region
        %s308 = ssub.s32 %s27, 1
        // Predicated region
        $region13: #{tpu_custom_call.1} parent=11 // pred_check
          %p309 = pneg %p100
        $region14: #{tpu_custom_call.1} parent=11 // pred_check_branch
          %311 = sbr.rel (%p309) target = $region16
        $region15: #{tpu_custom_call.1} parent=11 // pred_region
          %s313 = ssub.s32 128, 128
          %314 = vsyncadd [#allocation6], %s313
          %s315 = sshll.u32 [#allocation7], 4
          %s316 = int_to_ptr.vmem [resolvable:$true] %s315
          %321 = dma.hbm_to_vmem [thread:$0]  %s2, 128, %s316, [#allocation6], 64, 64, 4
        $region16: #{tpu_custom_call.1} parent=11 // pred_fallthru
          _
        // Predicated region
        $region17: #{tpu_custom_call.1} parent=11 // pred_check
          %p322 = pneg %p121
        $region18: #{tpu_custom_call.1} parent=11 // pred_check_branch
          %324 = sbr.rel (%p322) target = $region20
        $region19: #{tpu_custom_call.1} parent=11 // pred_region
          %s326 = ssub.s32 128, 128
          %327 = vsyncadd [#allocation9], %s326
          %s328 = sshll.u32 [#allocation8], 4
          %s329 = int_to_ptr.vmem [resolvable:$true] %s328
          %334 = dma.hbm_to_vmem [thread:$0]  %s3, 128, %s329, [#allocation9], 64, 64, 4
        $region20: #{tpu_custom_call.1} parent=11 // pred_fallthru
          _
        // Predicated region
        $region21: #{tpu_custom_call.1} parent=11 // pred_check
          %p335 = pneg %p142
        $region22: #{tpu_custom_call.1} parent=11 // pred_check_branch
          %337 = sbr.rel (%p335) target = $region24
        $region23: #{tpu_custom_call.1} parent=11 // pred_region
          _
        $region24: #{tpu_custom_call.1} parent=11 // pred_fallthru
          _
        // Predicated region
        $region25: #{tpu_custom_call.1} parent=11 // pred_check
          %p338 = pneg %p163
        $region26: #{tpu_custom_call.1} parent=11 // pred_check_branch
          %340 = sbr.rel (%p338) target = $region28
        $region27: #{tpu_custom_call.1} parent=11 // pred_region
          %s342 = ssub.s32 1024, 1024
          %343 = vsyncadd [#allocation9], %s342
          %s344 = sshll.u32 [#allocation10], 4
          %s345 = int_to_ptr.vmem [resolvable:$true] %s344
          %350 = dma.hbm_to_vmem [thread:$0]  %s5, 1024, %s345, [#allocation9], 64, 64, 4
        $region28: #{tpu_custom_call.1} parent=11 // pred_fallthru
          _
        // Predicated region
        $region29: #{tpu_custom_call.1} parent=11 // pred_check
          %p351 = pneg %p184
        $region30: #{tpu_custom_call.1} parent=11 // pred_check_branch
          %353 = sbr.rel (%p351) target = $region32
        $region31: #{tpu_custom_call.1} parent=11 // pred_region
          _
        $region32: #{tpu_custom_call.1} parent=11 // pred_fallthru
          _
        // Predicated region
        $region33: #{tpu_custom_call.1} parent=11 // pred_check
          %p354 = pneg %p205
        $region34: #{tpu_custom_call.1} parent=11 // pred_check_branch
          %356 = sbr.rel (%p354) target = $region36
        $region35: #{tpu_custom_call.1} parent=11 // pred_region
          %s358 = ssub.s32 1024, 1024
          %359 = vsyncadd [#allocation12], %s358
          %s360 = sshll.u32 [#allocation11], 4
          %s361 = int_to_ptr.vmem [resolvable:$true] %s360
          %366 = dma.hbm_to_vmem [thread:$0]  %s7, 1024, %s361, [#allocation12], 64, 64, 4
        $region36: #{tpu_custom_call.1} parent=11 // pred_fallthru
          _
        // Predicated region
        $region37: #{tpu_custom_call.1} parent=11 // pred_check
          %p367 = pneg %p226
        $region38: #{tpu_custom_call.1} parent=11 // pred_check_branch
          %369 = sbr.rel (%p367) target = $region40
        $region39: #{tpu_custom_call.1} parent=11 // pred_region
          _
        $region40: #{tpu_custom_call.1} parent=11 // pred_fallthru
          _
        // Predicated region
        $region41: #{tpu_custom_call.1} parent=11 // pred_check
          %p370 = pneg %p247
        $region42: #{tpu_custom_call.1} parent=11 // pred_check_branch
          %372 = sbr.rel (%p370) target = $region44
        $region43: #{tpu_custom_call.1} parent=11 // pred_region
          _
        $region44: #{tpu_custom_call.1} parent=11 // pred_fallthru
          _
        // Predicated region
        $region45: #{tpu_custom_call.1} parent=11 // pred_check
          %p373 = pneg %p268
        $region46: #{tpu_custom_call.1} parent=11 // pred_check_branch
          %375 = sbr.rel (%p373) target = $region48
        $region47: #{tpu_custom_call.1} parent=11 // pred_region
          _
        $region48: #{tpu_custom_call.1} parent=11 // pred_fallthru
          _
      $region12: #{tpu_custom_call.1} parent=5 // pred_fallthru
        _
      %p376 = scmp.lt.s32.totalorder %s27, 2
      // Predicated region
      $region49: #{tpu_custom_call.1} parent=5 // pred_check
        %p377 = pneg %p376
      $region50: #{tpu_custom_call.1} parent=5 // pred_check_branch
        %379 = sbr.rel (%p377) target = $region52
      $region51: #{tpu_custom_call.1} parent=5 // pred_region
        // Predicated region
        $region53: #{tpu_custom_call.1} parent=51 // pred_check
          %p380 = pneg %p47
        $region54: #{tpu_custom_call.1} parent=51 // pred_check_branch
          %382 = sbr.rel (%p380) target = $region56
        $region55: #{tpu_custom_call.1} parent=51 // pred_region
          %s383 = sand.u32 %s37, 1
          %s384 = scalar_lea.sflag [#allocation4], %s383
          %s385 = sand.u32 %s37, 1
          %s386 = smul.addr %s385, 8
          %s387 = scalar_lea.vmem [#allocation3], %s386
          %s389 = ssub.s32 128, 128
          %390 = vsyncadd %s384, %s389
          %s391 = smul.addr %s27, 128
          %s392 = scalar_lea.hbm %s0, %s391
          %s394 = sshll.u32 %s387, 4
          %s395 = int_to_ptr.vmem [resolvable:$true] %s394
          %397 = dma.hbm_to_vmem [thread:$0]  %s392, 128, %s395, %s384
        $region56: #{tpu_custom_call.1} parent=51 // pred_fallthru
          _
        // Predicated region
        $region57: #{tpu_custom_call.1} parent=51 // pred_check
          %p398 = pneg %p73
        $region58: #{tpu_custom_call.1} parent=51 // pred_check_branch
          %400 = sbr.rel (%p398) target = $region60
        $region59: #{tpu_custom_call.1} parent=51 // pred_region
          %s401 = sand.u32 %s27, 1
          %s402 = scalar_lea.sflag [#allocation6], %s401
          %s403 = sand.u32 %s63, 1
          %s404 = smul.addr %s403, 8
          %s405 = scalar_lea.vmem [#allocation5], %s404
          %s407 = ssub.s32 128, 128
          %408 = vsyncadd %s402, %s407
          %s409 = smul.addr %s27, 128
          %s410 = scalar_lea.hbm %s1, %s409
          %s412 = sshll.u32 %s405, 4
          %s413 = int_to_ptr.vmem [resolvable:$true] %s412
          %415 = dma.hbm_to_vmem [thread:$0]  %s410, 128, %s413, %s402
        $region60: #{tpu_custom_call.1} parent=51 // pred_fallthru
          _
      $region52: #{tpu_custom_call.1} parent=5 // pred_fallthru
        _
      %p416 = scmp.le.s32.totalorder 1, %s27
      %p417 = scmp.lt.s32.totalorder %s27, 3
      %p418 = pnand %p416, %p417
      %p419 = pneg %p418
      // Predicated region
      $region61: #{tpu_custom_call.1} parent=5 // pred_check
        _
      $region62: #{tpu_custom_call.1} parent=5 // pred_check_branch
        %421 = sbr.rel (%p418) target = $region64
      $region63: #{tpu_custom_call.1} parent=5 // pred_region
        %s422 = ssub.s32 %s27, 1
        %s423 = sand.u32 %s40, 1
        %s424 = scalar_lea.sflag [#allocation4], %s423
        %s425 = sand.u32 %s40, 1
        %s426 = smul.addr %s425, 8
        %s427 = scalar_lea.vmem [#allocation3], %s426
        // Predicated region
        $region65: #{tpu_custom_call.1} parent=63 // pred_check
          %p428 = pneg %p53
        $region66: #{tpu_custom_call.1} parent=63 // pred_check_branch
          %430 = sbr.rel (%p428) target = $region68
        $region67: #{tpu_custom_call.1} parent=63 // pred_region
          %431 = dma.done %s424, 128
        $region68: #{tpu_custom_call.1} parent=63 // pred_fallthru
          _
        %s432 = sand.u32 %s32, 1
        %s433 = scalar_lea.sflag [#allocation6], %s432
        %s434 = sand.u32 %s66, 1
        %s435 = smul.addr %s434, 8
        %s436 = scalar_lea.vmem [#allocation5], %s435
        // Predicated region
        $region69: #{tpu_custom_call.1} parent=63 // pred_check
          %p437 = pneg %p79
        $region70: #{tpu_custom_call.1} parent=63 // pred_check_branch
          %439 = sbr.rel (%p437) target = $region72
        $region71: #{tpu_custom_call.1} parent=63 // pred_region
          %440 = dma.done %s433, 128
        $region72: #{tpu_custom_call.1} parent=63 // pred_fallthru
          _
        // Predicated region
        $region73: #{tpu_custom_call.1} parent=63 // pred_check
          %p441 = pneg %p100
        $region74: #{tpu_custom_call.1} parent=63 // pred_check_branch
          %443 = sbr.rel (%p441) target = $region76
        $region75: #{tpu_custom_call.1} parent=63 // pred_region
          %444 = dma.done [#allocation6], 128
        $region76: #{tpu_custom_call.1} parent=63 // pred_fallthru
          _
        // Predicated region
        $region77: #{tpu_custom_call.1} parent=63 // pred_check
          %p445 = pneg %p121
        $region78: #{tpu_custom_call.1} parent=63 // pred_check_branch
          %447 = sbr.rel (%p445) target = $region80
        $region79: #{tpu_custom_call.1} parent=63 // pred_region
          %448 = dma.done [#allocation9], 128
        $region80: #{tpu_custom_call.1} parent=63 // pred_fallthru
          _
        // Predicated region
        $region81: #{tpu_custom_call.1} parent=63 // pred_check
          %p449 = pneg %p163
        $region82: #{tpu_custom_call.1} parent=63 // pred_check_branch
          %451 = sbr.rel (%p449) target = $region84
        $region83: #{tpu_custom_call.1} parent=63 // pred_region
          %452 = dma.done [#allocation9], 1024
        $region84: #{tpu_custom_call.1} parent=63 // pred_fallthru
          _
        // Predicated region
        $region85: #{tpu_custom_call.1} parent=63 // pred_check
          %p453 = pneg %p205
        $region86: #{tpu_custom_call.1} parent=63 // pred_check_branch
          %455 = sbr.rel (%p453) target = $region88
        $region87: #{tpu_custom_call.1} parent=63 // pred_region
          %456 = dma.done [#allocation12], 1024
        $region88: #{tpu_custom_call.1} parent=63 // pred_fallthru
          _
        %s457 = sand.u32 %s40, 1
        %s458 = scalar_lea.sflag [#allocation4], %s457
        %s459 = sand.u32 %s40, 1
        %s460 = smul.addr %s459, 8
        %s461 = scalar_lea.vmem [#allocation3], %s460
        %p462 = pneg %p53
        %p463 = pneg %p50
        %s464 = sand.u32 %s32, 1
        %s465 = scalar_lea.sflag [#allocation6], %s464
        %s466 = sand.u32 %s66, 1
        %s467 = smul.addr %s466, 8
        %s468 = scalar_lea.vmem [#allocation5], %s467
        %p469 = pneg %p79
        %p470 = pneg %p76
        %p471 = pneg %p100
        %p472 = pneg %p97
        %p473 = pneg %p121
        %p474 = pneg %p118
        %p475 = pneg %p142
        %p476 = pneg %p139
        %p477 = pneg %p163
        %p478 = pneg %p160
        %p479 = pneg %p184
        %p480 = pneg %p181
        %p481 = pneg %p205
        %p482 = pneg %p202
        %p483 = pneg %p226
        %p484 = pneg %p223
        %p485 = pneg %p247
        %p486 = pneg %p244
        %p487 = pneg %p268
        %p488 = pneg %p265
        %p489 = pneg %p294
        %p490 = pneg %p291
        %p491 = scmp.lt.s32.totalorder %s32, 1
        %s492 = scalar_select %p491, %s32, 1
        %s493 = smul.addr %s492, 8
        %s494 = scalar_lea.vmem %s11, %s493
        %p495 = scmp.lt.s32.totalorder %s32, 1
        %s496 = scalar_select %p495, %s32, 1
        %s497 = smul.addr %s496, 8
        %s498 = scalar_lea.vmem %s11, %s497
        %v500 = vld [vmem:[%s427] sm:$0xff]
        %v501 = vpack.c.bf16 %v500, %v500
        %v502 = vld [vmem:[#allocation7] sm:$0xf]
        %v503 = vld [vmem:[#allocation7 + $0x4] sm:$0xf]
        %v504 = vld [vmem:[%s436] sm:$0xff]
        %v505 = vpack.c.bf16 %v504, %v504
        %v506 = vld [vmem:[#allocation8] sm:$0xf]
        %v507 = vld [vmem:[#allocation8 + $0x4] sm:$0xf]
        %v510 = vunpack.c.l.b16 %v506
        %v511 = vunpack.c.l.b16 %v507
        %v512 = vpack.c.b16 %v511, %v510
        %vm514 = vcmask 130048
        %v516 = vsel %vm514, %v505, 0
        %518 = vmatprep.subr.bf16.mxu0 0
        %519 = vmatpush1.bf16.msra.mxu0 0
        %520 = vmatprep.subr.bf16.mxu0 0
        %521 = vmatpush1.bf16.msra.mxu0 0
        %522 = vmatprep.subr.bf16.mxu0 0
        %523 = vmatpush1.bf16.msra.mxu0 0
        %524 = vmatprep.subr.bf16.mxu0 0
        %525 = vmatpush1.bf16.msra.mxu0 0
        %526 = vmatprep.subr.bf16.mxu0 0
        %527 = vmatpush1.bf16.msra.mxu0 0
        %528 = vmatprep.subr.bf16.mxu0 0
        %529 = vmatpush1.bf16.msra.mxu0 0
        %530 = vmatprep.subr.bf16.mxu0 0
        %531 = vmatpush1.bf16.msra.mxu0 0
        %532 = vmatprep.subr.bf16.mxu0 0
        %533 = vmatpush1.bf16.msra.mxu0 %v512
        %534 = vmatprep.subr.bf16.mxu0 0
        %535 = vmatpush2.bf16.msra.mxu0 0
        %536 = vmatprep.subr.bf16.mxu0 0
        %537 = vmatpush2.bf16.msra.mxu0 0
        %538 = vmatprep.subr.bf16.mxu0 0
        %539 = vmatpush2.bf16.msra.mxu0 0
        %540 = vmatprep.subr.bf16.mxu0 0
        %541 = vmatpush2.bf16.msra.mxu0 0
        %542 = vmatprep.subr.bf16.mxu0 0
        %543 = vmatpush2.bf16.msra.mxu0 0
        %544 = vmatprep.subr.bf16.mxu0 0
        %545 = vmatpush2.bf16.msra.mxu0 0
        %546 = vmatprep.subr.bf16.mxu0 0
        %547 = vmatpush2.bf16.msra.mxu0 0
        %548 = vmatprep.subr.bf16.mxu0 0
        %549 = vmatpush2.bf16.msra.mxu0 0
        %550 = vmatprep.mubr.bf16.mxu0 0
        %551 = vmatmul.mubr.bf16.gmra.mxu0 %v516
        %v552 = vpop.f32.mrf.mxu0
        %v553 = vadd.f32 0.0, %v552
        %v554 = vpop.f32.mrf.mxu0
        %v555 = vpop.f32.mrf.mxu0
        %v556 = vpop.f32.mrf.mxu0
        %557 = vdwg.mxu0
        %v560 = vunpack.c.l.b16 %v502
        %v561 = vunpack.c.l.b16 %v503
        %v562 = vpack.c.b16 %v561, %v560
        %v565 = vsel %vm514, %v501, 0
        %567 = vmatprep.subr.bf16.mxu0 0
        %568 = vmatpush1.bf16.msra.mxu0 0
        %569 = vmatprep.subr.bf16.mxu0 0
        %570 = vmatpush1.bf16.msra.mxu0 0
        %571 = vmatprep.subr.bf16.mxu0 0
        %572 = vmatpush1.bf16.msra.mxu0 0
        %573 = vmatprep.subr.bf16.mxu0 0
        %574 = vmatpush1.bf16.msra.mxu0 0
        %575 = vmatprep.subr.bf16.mxu0 0
        %576 = vmatpush1.bf16.msra.mxu0 0
        %577 = vmatprep.subr.bf16.mxu0 0
        %578 = vmatpush1.bf16.msra.mxu0 0
        %579 = vmatprep.subr.bf16.mxu0 0
        %580 = vmatpush1.bf16.msra.mxu0 0
        %581 = vmatprep.subr.bf16.mxu0 0
        %582 = vmatpush1.bf16.msra.mxu0 %v562
        %583 = vmatprep.subr.bf16.mxu0 0
        %584 = vmatpush2.bf16.msra.mxu0 0
        %585 = vmatprep.subr.bf16.mxu0 0
        %586 = vmatpush2.bf16.msra.mxu0 0
        %587 = vmatprep.subr.bf16.mxu0 0
        %588 = vmatpush2.bf16.msra.mxu0 0
        %589 = vmatprep.subr.bf16.mxu0 0
        %590 = vmatpush2.bf16.msra.mxu0 0
        %591 = vmatprep.subr.bf16.mxu0 0
        %592 = vmatpush2.bf16.msra.mxu0 0
        %593 = vmatprep.subr.bf16.mxu0 0
        %594 = vmatpush2.bf16.msra.mxu0 0
        %595 = vmatprep.subr.bf16.mxu0 0
        %596 = vmatpush2.bf16.msra.mxu0 0
        %597 = vmatprep.subr.bf16.mxu0 0
        %598 = vmatpush2.bf16.msra.mxu0 0
        %599 = vmatprep.mubr.bf16.mxu0 0
        %600 = vmatmul.mubr.bf16.gmra.mxu0 %v565
        %v601 = vpop.f32.mrf.mxu0
        %v602 = vadd.f32 %v553, %v601
        %v603 = vpop.f32.mrf.mxu0
        %v604 = vpop.f32.mrf.mxu0
        %v605 = vpop.f32.mrf.mxu0
        %606 = vdwg.mxu0
        %v607 = vld [vmem:[%s4] sm:$0x1]
        %v609 = vlaneseq
        %v610 = vshrl.u32 %v609, 7
        %v611 = vsub.s32 0, %v610
        %v612 = vrot.slane %v607, %v611
        %v614 = vadd.f32 %v602, %v612
        %vm615 = vcmp.gt.f32.partialorder %v614, 0.0
        %v616 = vmin.f32 %v614, 0.0
        %v617 = vmul.f32 %v616, 1.442695
        %v618 = vpow.pop %v617
        %v619 = vsub.f32 %v618, 1.0
        %v620 = vsel %vm615, %v614, %v619
        %v621 = vpack.c.bf16 %v620, %v620
        %v622 = vld [vmem:[#allocation10] sm:$0xf]
        %v623 = vld [vmem:[#allocation10 + $0x4] sm:$0xf]
        %v624 = vld [vmem:[#allocation10 + $0x8] sm:$0xf]
        %v625 = vld [vmem:[#allocation10 + $0xc] sm:$0xf]
        %v626 = vld [vmem:[#allocation10 + $0x10] sm:$0xf]
        %v627 = vld [vmem:[#allocation10 + $0x14] sm:$0xf]
        %v628 = vld [vmem:[#allocation10 + $0x18] sm:$0xf]
        %v629 = vld [vmem:[#allocation10 + $0x1c] sm:$0xf]
        %v630 = vld [vmem:[#allocation10 + $0x20] sm:$0xf]
        %v631 = vld [vmem:[#allocation10 + $0x24] sm:$0xf]
        %v632 = vld [vmem:[#allocation10 + $0x28] sm:$0xf]
        %v633 = vld [vmem:[#allocation10 + $0x2c] sm:$0xf]
        %v634 = vld [vmem:[#allocation10 + $0x30] sm:$0xf]
        %v635 = vld [vmem:[#allocation10 + $0x34] sm:$0xf]
        %v636 = vld [vmem:[#allocation10 + $0x38] sm:$0xf]
        %v637 = vld [vmem:[#allocation10 + $0x3c] sm:$0xf]
        %v638 = vld [vmem:[%s6] sm:$0x1]
        %v640 = vlaneseq
        %v641 = vshrl.u32 %v640, 7
        %v642 = vsub.s32 0, %v641
        %v643 = vrot.slane %v638, %v642
        %v661 = vunpack.c.l.b16 %v622
        %v662 = vunpack.c.l.b16 %v623
        %v663 = vunpack.c.l.b16 %v624
        %v664 = vunpack.c.l.b16 %v625
        %v665 = vunpack.c.l.b16 %v626
        %v666 = vunpack.c.l.b16 %v627
        %v667 = vunpack.c.l.b16 %v628
        %v668 = vunpack.c.l.b16 %v629
        %v669 = vunpack.c.l.b16 %v630
        %v670 = vunpack.c.l.b16 %v631
        %v671 = vunpack.c.l.b16 %v632
        %v672 = vunpack.c.l.b16 %v633
        %v673 = vunpack.c.l.b16 %v634
        %v674 = vunpack.c.l.b16 %v635
        %v675 = vunpack.c.l.b16 %v636
        %v676 = vunpack.c.l.b16 %v637
        %v677 = vpack.c.b16 %v662, %v661
        %v678 = vpack.c.b16 %v664, %v663
        %v679 = vpack.c.b16 %v666, %v665
        %v680 = vpack.c.b16 %v668, %v667
        %v681 = vpack.c.b16 %v670, %v669
        %v682 = vpack.c.b16 %v672, %v671
        %v683 = vpack.c.b16 %v674, %v673
        %v684 = vpack.c.b16 %v676, %v675
        %693 = vmatprep.subr.bf16.mxu0 0
        %694 = vmatpush1.bf16.msra.mxu0 %v684
        %695 = vmatprep.subr.bf16.mxu0 0
        %696 = vmatpush1.bf16.msra.mxu0 %v683
        %697 = vmatprep.subr.bf16.mxu0 0
        %698 = vmatpush1.bf16.msra.mxu0 %v682
        %699 = vmatprep.subr.bf16.mxu0 0
        %700 = vmatpush1.bf16.msra.mxu0 %v681
        %701 = vmatprep.subr.bf16.mxu0 0
        %702 = vmatpush1.bf16.msra.mxu0 %v680
        %703 = vmatprep.subr.bf16.mxu0 0
        %704 = vmatpush1.bf16.msra.mxu0 %v679
        %705 = vmatprep.subr.bf16.mxu0 0
        %706 = vmatpush1.bf16.msra.mxu0 %v678
        %707 = vmatprep.subr.bf16.mxu0 0
        %708 = vmatpush1.bf16.msra.mxu0 %v677
        %709 = vmatprep.subr.bf16.mxu0 0
        %710 = vmatpush2.bf16.msra.mxu0 0
        %711 = vmatprep.subr.bf16.mxu0 0
        %712 = vmatpush2.bf16.msra.mxu0 0
        %713 = vmatprep.subr.bf16.mxu0 0
        %714 = vmatpush2.bf16.msra.mxu0 0
        %715 = vmatprep.subr.bf16.mxu0 0
        %716 = vmatpush2.bf16.msra.mxu0 0
        %717 = vmatprep.subr.bf16.mxu0 0
        %718 = vmatpush2.bf16.msra.mxu0 0
        %719 = vmatprep.subr.bf16.mxu0 0
        %720 = vmatpush2.bf16.msra.mxu0 0
        %721 = vmatprep.subr.bf16.mxu0 0
        %722 = vmatpush2.bf16.msra.mxu0 0
        %723 = vmatprep.subr.bf16.mxu0 0
        %724 = vmatpush2.bf16.msra.mxu0 0
        %725 = vmatprep.mubr.bf16.mxu0 0
        %726 = vmatmul.mubr.bf16.gmra.mxu0 %v621
        %v727 = vpop.f32.mrf.mxu0
        %v728 = vadd.f32 %v643, %v727
        %v729 = vpop.f32.mrf.mxu0
        %v730 = vpop.f32.mrf.mxu0
        %v731 = vpop.f32.mrf.mxu0
        %732 = vdwg.mxu0
        %vm733 = vcmp.gt.f32.partialorder %v728, 0.0
        %v734 = vmin.f32 %v728, 0.0
        %v735 = vmul.f32 %v734, 1.442695
        %v736 = vpow.pop %v735
        %v737 = vsub.f32 %v736, 1.0
        %v738 = vsel %vm733, %v728, %v737
        %v739 = vpack.c.bf16 %v738, %v738
        %v740 = vld [vmem:[#allocation11] sm:$0xf]
        %v741 = vld [vmem:[#allocation11 + $0x4] sm:$0xf]
        %v742 = vld [vmem:[#allocation11 + $0x8] sm:$0xf]
        %v743 = vld [vmem:[#allocation11 + $0xc] sm:$0xf]
        %v744 = vld [vmem:[#allocation11 + $0x10] sm:$0xf]
        %v745 = vld [vmem:[#allocation11 + $0x14] sm:$0xf]
        %v746 = vld [vmem:[#allocation11 + $0x18] sm:$0xf]
        %v747 = vld [vmem:[#allocation11 + $0x1c] sm:$0xf]
        %v748 = vld [vmem:[#allocation11 + $0x20] sm:$0xf]
        %v749 = vld [vmem:[#allocation11 + $0x24] sm:$0xf]
        %v750 = vld [vmem:[#allocation11 + $0x28] sm:$0xf]
        %v751 = vld [vmem:[#allocation11 + $0x2c] sm:$0xf]
        %v752 = vld [vmem:[#allocation11 + $0x30] sm:$0xf]
        %v753 = vld [vmem:[#allocation11 + $0x34] sm:$0xf]
        %v754 = vld [vmem:[#allocation11 + $0x38] sm:$0xf]
        %v755 = vld [vmem:[#allocation11 + $0x3c] sm:$0xf]
        %v756 = vld [vmem:[%s8] sm:$0x1]
        %v758 = vlaneseq
        %v759 = vshrl.u32 %v758, 7
        %v760 = vsub.s32 0, %v759
        %v761 = vrot.slane %v756, %v760
        %v779 = vunpack.c.l.b16 %v740
        %v780 = vunpack.c.l.b16 %v741
        %v781 = vunpack.c.l.b16 %v742
        %v782 = vunpack.c.l.b16 %v743
        %v783 = vunpack.c.l.b16 %v744
        %v784 = vunpack.c.l.b16 %v745
        %v785 = vunpack.c.l.b16 %v746
        %v786 = vunpack.c.l.b16 %v747
        %v787 = vunpack.c.l.b16 %v748
        %v788 = vunpack.c.l.b16 %v749
        %v789 = vunpack.c.l.b16 %v750
        %v790 = vunpack.c.l.b16 %v751
        %v791 = vunpack.c.l.b16 %v752
        %v792 = vunpack.c.l.b16 %v753
        %v793 = vunpack.c.l.b16 %v754
        %v794 = vunpack.c.l.b16 %v755
        %v795 = vpack.c.b16 %v780, %v779
        %v796 = vpack.c.b16 %v782, %v781
        %v797 = vpack.c.b16 %v784, %v783
        %v798 = vpack.c.b16 %v786, %v785
        %v799 = vpack.c.b16 %v788, %v787
        %v800 = vpack.c.b16 %v790, %v789
        %v801 = vpack.c.b16 %v792, %v791
        %v802 = vpack.c.b16 %v794, %v793
        %811 = vmatprep.subr.bf16.mxu0 0
        %812 = vmatpush1.bf16.msra.mxu0 %v802
        %813 = vmatprep.subr.bf16.mxu0 0
        %814 = vmatpush1.bf16.msra.mxu0 %v801
        %815 = vmatprep.subr.bf16.mxu0 0
        %816 = vmatpush1.bf16.msra.mxu0 %v800
        %817 = vmatprep.subr.bf16.mxu0 0
        %818 = vmatpush1.bf16.msra.mxu0 %v799
        %819 = vmatprep.subr.bf16.mxu0 0
        %820 = vmatpush1.bf16.msra.mxu0 %v798
        %821 = vmatprep.subr.bf16.mxu0 0
        %822 = vmatpush1.bf16.msra.mxu0 %v797
        %823 = vmatprep.subr.bf16.mxu0 0
        %824 = vmatpush1.bf16.msra.mxu0 %v796
        %825 = vmatprep.subr.bf16.mxu0 0
        %826 = vmatpush1.bf16.msra.mxu0 %v795
        %827 = vmatprep.subr.bf16.mxu0 0
        %828 = vmatpush2.bf16.msra.mxu0 0
        %829 = vmatprep.subr.bf16.mxu0 0
        %830 = vmatpush2.bf16.msra.mxu0 0
        %831 = vmatprep.subr.bf16.mxu0 0
        %832 = vmatpush2.bf16.msra.mxu0 0
        %833 = vmatprep.subr.bf16.mxu0 0
        %834 = vmatpush2.bf16.msra.mxu0 0
        %835 = vmatprep.subr.bf16.mxu0 0
        %836 = vmatpush2.bf16.msra.mxu0 0
        %837 = vmatprep.subr.bf16.mxu0 0
        %838 = vmatpush2.bf16.msra.mxu0 0
        %839 = vmatprep.subr.bf16.mxu0 0
        %840 = vmatpush2.bf16.msra.mxu0 0
        %841 = vmatprep.subr.bf16.mxu0 0
        %842 = vmatpush2.bf16.msra.mxu0 0
        %843 = vmatprep.mubr.bf16.mxu0 0
        %844 = vmatmul.mubr.bf16.gmra.mxu0 %v739
        %v845 = vpop.f32.mrf.mxu0
        %v846 = vadd.f32 %v761, %v845
        %v847 = vpop.f32.mrf.mxu0
        %v848 = vpop.f32.mrf.mxu0
        %v849 = vpop.f32.mrf.mxu0
        %850 = vdwg.mxu0
        %vm851 = vcmp.gt.f32.partialorder %v846, 0.0
        %v852 = vmin.f32 %v846, 0.0
        %v853 = vmul.f32 %v852, 1.442695
        %v854 = vpow.pop %v853
        %v855 = vsub.f32 %v854, 1.0
        %v856 = vsel %vm851, %v846, %v855
        %v857 = vld [vmem:[%s9] sm:$0x1]
        %v859 = vlaneseq
        %v860 = vshrl.u32 %v859, 7
        %v861 = vsub.s32 0, %v860
        %v862 = vrot.slane %v857, %v861
        %v864 = vmul.f32 %v856, %v862
        %865 = vadd.xlane.f32.xlu0 %v864
        %v866 = vpop.xlane.xlu0 %865
        %v867 = vld [vmem:[#allocation2] sm:$0x1]
        %v869 = vlaneseq
        %v870 = vshrl.u32 %v869, 7
        %v871 = vsub.s32 0, %v870
        %v872 = vrot.slane %v867, %v871
        %v874 = vadd.f32 %v866, %v872
        %vm875 = vcmask 7168
        %876 = vst.msk [vmem:[%s498] sm:$0xff] %vm875, %v874
        %p877 = scmp.lt.s32.totalorder %s32, 1
        %s878 = scalar_select %p877, %s32, 1
        %s879 = smul.addr %s878, 8
        %s880 = scalar_lea.vmem %s11, %s879
        // Predicated region
        $region89: #{tpu_custom_call.1} parent=63 // pred_check
          %p881 = pneg %p291
        $region90: #{tpu_custom_call.1} parent=63 // pred_check_branch
          %883 = sbr.rel (%p881) target = $region92
        $region91: #{tpu_custom_call.1} parent=63 // pred_region
          _
        $region92: #{tpu_custom_call.1} parent=63 // pred_fallthru
          _
      $region64: #{tpu_custom_call.1} parent=5 // pred_fallthru
        _
      %p884 = scmp.le.s32.totalorder 2, %s27
      // Predicated region
      $region93: #{tpu_custom_call.1} parent=5 // pred_check
        %p885 = pneg %p884
      $region94: #{tpu_custom_call.1} parent=5 // pred_check_branch
        %887 = sbr.rel (%p885) target = $region96
      $region95: #{tpu_custom_call.1} parent=5 // pred_region
        %s888 = ssub.s32 %s27, 2
        // Predicated region
        $region97: #{tpu_custom_call.1} parent=95 // pred_check
          %p889 = pneg %p297
        $region98: #{tpu_custom_call.1} parent=95 // pred_check_branch
          %891 = sbr.rel (%p889) target = $region100
        $region99: #{tpu_custom_call.1} parent=95 // pred_region
          %p892 = scmp.lt.s32.totalorder %s33, 1
          %s893 = scalar_select %p892, %s33, 1
          %s894 = smul.addr %s893, 8
          %s895 = scalar_lea.vmem %s11, %s894
        $region100: #{tpu_custom_call.1} parent=95 // pred_fallthru
          _
      $region96: #{tpu_custom_call.1} parent=5 // pred_fallthru
        _
    $region6: #{tpu_custom_call.1} parent=1 // loop_footer
      %s31 = sadd.s32 1, %s27
    $region7: #{tpu_custom_call.1} parent=1 // loop_footer_branch
      %26 = sbr.rel target = $region3
    $region8: #{tpu_custom_call.1} parent=1 // loop_exit
      _
    %896 = vsyncpa [#allocation4], 1
    %s897 = scalar_lea.sflag [#allocation4], 1
    %898 = vsyncpa %s897, 1
    %899 = vsyncpa [#allocation6], 1
    %s900 = scalar_lea.sflag [#allocation6], 1
    %901 = vsyncpa %s900, 1
    %902 = vsyncpa [#allocation9], 1
    %903 = vsyncpa [#allocation12], 1

</llo_original>
